<compile_context>
chip_gen: v5e
topology: v5e:2x2
jax: 0.10.0
libtpu: 0.0.40
codegen_flags: <defaults>
</compile_context>

<pallas_src>
import jax
import jax.numpy as jnp
from jax.experimental import pallas as pl
from jax.experimental.pallas import tpu as pltpu


def _mish_kernel(x_ref, o_ref):
    x = x_ref[...].astype(jnp.float32)
    # tanh(softplus(x)) == (e^2 + 2e) / (e^2 + 2e + 2), with e = exp(x).
    # Clamp at 20: tanh(softplus(20)) == 1 to well below f32 eps, and it keeps
    # e*e finite in f32.  den >= 2 always, so the divide never blows up.
    e = jnp.exp(jnp.minimum(x, 20.0))
    num = e * (e + 2.0)
    t = num / (num + 2.0)  # exact f32 divide; kernel is HBM-bound, VPU/EUP have slack
    o_ref[...] = (x * t).astype(o_ref.dtype)


def _mish_jnp(x):
    """Accurate reference-style Mish for tiny tails (<128 elements)."""
    xf = x.astype(jnp.float32)
    sp = jnp.maximum(xf, 0.0) + jnp.log1p(jnp.exp(-jnp.abs(xf)))
    return (xf * jnp.tanh(sp)).astype(x.dtype)


def _device_config():
    """Generation-aware block size / VMEM limit / TensorCore count."""
    kind = ""
    try:
        kind = (getattr(jax.devices()[0], "device_kind", "") or "").lower()
    except Exception:
        pass
    if "v7" in kind:
        # 2 TCs/chip, 64 MiB physical VMEM -> modest blocks, real cross-TC sharding.
        return {"block_bytes": 2 << 20, "vmem_limit": 32 << 20, "num_tc": 2}
    if "v6" in kind:
        return {"block_bytes": 4 << 20, "vmem_limit": 64 << 20, "num_tc": 1}
    if "v5" in kind and ("lite" in kind or "v5e" in kind or "5e" in kind):
        return {"block_bytes": 2 << 20, "vmem_limit": 32 << 20, "num_tc": 1}
    # Unknown chip / interpret mode: conservative defaults, leave VMEM limit alone.
    return {"block_bytes": 2 << 20, "vmem_limit": None, "num_tc": 1}


def mish(x, *, target_block_bytes=None):
    """Elementwise Mish over any shape/dtype, computed in a lane-dense 2-D view."""
    orig_shape = x.shape
    orig_dtype = x.dtype
    n = x.size
    if n == 0:
        return x

    lane = 128
    itemsize = jnp.dtype(orig_dtype).itemsize
    # Sublane packing granularity: 8 for 4-byte, 16 for 2-byte, 32 for 1-byte dtypes.
    sub = 8 * max(1, 4 // itemsize)

    flat = jnp.reshape(x, (-1,))
    n_aligned = (n // lane) * lane
    if n_aligned == 0:
        # Fewer than 128 elements: a kernel launch is pure overhead.
        return jnp.reshape(_mish_jnp(flat), orig_shape)

    cfg = _device_config()
    tb = target_block_bytes if target_block_bytes is not None else cfg["block_bytes"]
    if itemsize < 4:
        # The body upcasts to f32: bound live temporaries for bf16/int8 blocks.
        tb = min(tb, 1 << 20)

    head = flat if n_aligned == n else flat[:n_aligned]
    rows = n_aligned // lane
    x2d = jnp.reshape(head, (rows, lane))

    # Biggest lane-dense block the per-generation budget allows, sublane aligned.
    tile_rows = max(sub, (tb // (lane * itemsize)) // sub * sub)
    if tile_rows >= rows:
        if cfg["num_tc"] >= 2 and rows >= 4 * sub:
            # Two blocks so both TensorCores (v7x) get work.
            tile_rows = ((rows + 1) // 2 + sub - 1) // sub * sub
        else:
            # Single-TC chip: one full-size block (no per-step overhead, best DMA).
            tile_rows = rows
    grid = (pl.cdiv(rows, tile_rows),)

    # Real cross-TC sharding only helps on multi-TC chips; plain "parallel" elsewhere.
    dim_sem = ("parallel",)
    if cfg["num_tc"] >= 2 and grid[0] >= 2:
        dim_sem = (getattr(pltpu, "CORE_PARALLEL", "parallel"),)

    out2d = pl.pallas_call(
        _mish_kernel,
        out_shape=jax.ShapeDtypeStruct((rows, lane), orig_dtype),
        grid_spec=pltpu.PrefetchScalarGridSpec(
            num_scalar_prefetch=0,
            grid=grid,
            in_specs=[pl.BlockSpec((tile_rows, lane), lambda i: (i, 0))],
            out_specs=pl.BlockSpec((tile_rows, lane), lambda i: (i, 0)),
        ),
        compiler_params=pltpu.CompilerParams(
            dimension_semantics=dim_sem,
            vmem_limit_bytes=cfg["vmem_limit"],
        ),
        cost_estimate=pl.CostEstimate(
            flops=6 * n_aligned,
            transcendentals=2 * n_aligned,     # exp + divide per element
            bytes_accessed=2 * n_aligned * itemsize,
        ),
    )(x2d)

    out_flat = jnp.reshape(out2d, (-1,))
    if n_aligned != n:
        # <=127-element tail: tiny jnp compute instead of padding the whole array.
        out_flat = jnp.concatenate([out_flat, _mish_jnp(flat[n_aligned:])])
    return jnp.reshape(out_flat, orig_shape)


def mish_ref(x):
    xf = x.astype(jnp.float32)
    sp = jnp.maximum(xf, 0.0) + jnp.log1p(jnp.exp(-jnp.abs(xf)))
    return (xf * jnp.tanh(sp)).astype(x.dtype)


if __name__ == "__main__":
    key = jax.random.PRNGKey(0)

    # NCHW input, matching the PyTorch module's expected conv-feature input.
    x = jax.random.normal(key, (2, 4, 16, 16), dtype=jnp.float32) * 3.0
    y = jax.block_until_ready(mish(x))
    y_ref = mish_ref(x)
    assert y.shape == x.shape and y.dtype == x.dtype
    assert jnp.allclose(y, y_ref, atol=1e-5, rtol=1e-5)

    # Odd size (not a multiple of 128) -> kernel on the aligned prefix + jnp tail.
    x_odd = jax.random.normal(jax.random.PRNGKey(1), (3, 5, 7, 11), dtype=jnp.float32) * 4.0
    y_odd = jax.block_until_ready(mish(x_odd))
    assert jnp.allclose(y_odd, mish_ref(x_odd), atol=1e-5, rtol=1e-5)

    # Multi-block grid with a masked partial last block (rows=96, tile_rows=40).
    x_mb = jax.random.normal(jax.random.PRNGKey(3), (4, 8, 24, 16), dtype=jnp.float32) * 3.0
    y_mb = jax.block_until_ready(mish(x_mb, target_block_bytes=40 * 128 * 4))
    assert jnp.allclose(y_mb, mish_ref(x_mb), atol=1e-5, rtol=1e-5)

    # bf16 path (sublane packing = 16; block bytes capped for f32 temporaries).
    x_bf = (jax.random.normal(jax.random.PRNGKey(2), (2, 4, 16, 16)) * 3.0).astype(jnp.bfloat16)
    y_bf = jax.block_until_ready(mish(x_bf))
    assert y_bf.dtype == jnp.bfloat16
    assert jnp.allclose(y_bf.astype(jnp.float32), mish_ref(x_bf).astype(jnp.float32),
                        atol=8e-2, rtol=2e-2)

    print("KERNEL_OK")
</pallas_src>

<mosaic_0001>
module attributes {stable_mosaic.version = 11 : i64} {
  func.func @_mish_kernel(%arg0: i32, %arg1: memref<16x128xf32, #tpu.memory_space<vmem>>, %arg2: memref<16x128xf32, #tpu.memory_space<vmem>>) attributes {dimension_semantics = [#tpu.dimension_semantics<parallel>], iteration_bounds = array<i64: 1>, scalar_prefetch = 0 : i64, scratch_operands = 0 : i64, tpu.core_type = #tpu.core_type<tc>, window_params = [{transform_indices = @transform_0, window_bounds = array<i64: 16, 128>}, {transform_indices = @transform_1, window_bounds = array<i64: 16, 128>}]} {
    %c0 = arith.constant 0 : index
    %c0_0 = arith.constant 0 : index
    %0 = vector.load %arg1[%c0, %c0_0] : memref<16x128xf32, #tpu.memory_space<vmem>>, vector<16x128xf32>
    %cst = arith.constant 2.000000e+01 : f32
    %1 = vector.broadcast %cst : f32 to vector<16x128xf32>
    %2 = arith.minimumf %0, %1 : vector<16x128xf32>
    %3 = math.exp %2 : vector<16x128xf32>
    %cst_1 = arith.constant 2.000000e+00 : f32
    %4 = vector.broadcast %cst_1 : f32 to vector<16x128xf32>
    %5 = arith.addf %3, %4 : vector<16x128xf32>
    %6 = arith.mulf %3, %5 : vector<16x128xf32>
    %cst_2 = arith.constant 2.000000e+00 : f32
    %7 = vector.broadcast %cst_2 : f32 to vector<16x128xf32>
    %8 = arith.addf %6, %7 : vector<16x128xf32>
    %9 = arith.divf %6, %8 : vector<16x128xf32>
    %10 = arith.mulf %0, %9 : vector<16x128xf32>
    %c0_3 = arith.constant 0 : index
    %c0_4 = arith.constant 0 : index
    %11 = vector.load %arg2[%c0_3, %c0_4] : memref<16x128xf32, #tpu.memory_space<vmem>>, vector<16x128xf32>
    tpu.vector_store %arg2[%c0_3, %c0_4], %10 {strides = array<i32>} : memref<16x128xf32, #tpu.memory_space<vmem>>, vector<16x128xf32>,
    return
  }
  func.func @transform_0(%arg0: i32) -> (i32, i32) {
    %c0_i32 = arith.constant 0 : i32
    %c0_i32_0 = arith.constant 0 : i32
    return %arg0, %c0_i32 : i32, i32
  }
  func.func @transform_1(%arg0: i32) -> (i32, i32) {
    %c0_i32 = arith.constant 0 : i32
    %c0_i32_0 = arith.constant 0 : i32
    return %arg0, %c0_i32 : i32, i32
  }
}

</mosaic_0001>

<llo_original>
// kernel: tpu_custom_call.1
$region0: #{tpu_custom_call.1}
  #allocation0 [shape = 'u32[]', space=smem, size = 0x4, offset = 0x4, fixed_abs, tag = 'smem constant byte address 0x4 - core index']
  #allocation1 [shape = 'u32[72,128]{1,0:T(1,128)}', space=vmem, size = 0x9000, scoped, tag = 'internal scratch']
  %s0 = inlined_call_operand.hbm [shape: f32[16,128], index: 0, kind: input, shape index: {}]
  %s1 = inlined_call_operand.hbm [shape: f32[16,128], index: 1, kind: output, shape index: {}]
  %s2 = sld [smem:[#allocation0]]
  $region18: #{tpu_custom_call.1} parent=0
    _
  %s4 = ssub.s32 1, %s2
  %s5 = scalar_select 0, %s4, %s2
  $region1: #{tpu_custom_call.1} parent=0
    #allocation2 [shape = 'u8[8192]{0}', space=vmem, size = 0x2000, scoped, tag = 'input window, operand 0, single buffered']
    #allocation3 [shape = 's32[1]{0}', space=sflag, size = 0x4, scoped, tag = 'scoped memory for tpu_custom_call.1']
    #allocation4 [shape = 's32[1]{0}', space=sflag, size = 0x4, scoped, tag = 'scoped memory for tpu_custom_call.1']
    #allocation5 [shape = 'u8[8192]{0}', space=vmem, size = 0x2000, scoped, tag = 'output window, operand 0, single buffered']
    %6 = vsyncpa [#allocation3], 0
    %7 = vsyncpa [#allocation4], 0
    // Predicated region
    $region2: #{tpu_custom_call.1} parent=1 // pred_check
      _
    $region3: #{tpu_custom_call.1} parent=1 // pred_check_branch
      %9 = sbr.rel (0) target = $region5
    $region4: #{tpu_custom_call.1} parent=1 // pred_region
      %11 = vsyncadd [#allocation3], 0
      %s12 = sshll.u32 %s0, 4
      %s13 = int_to_ptr.hbm [resolvable:$true] %s12
      %s14 = sshll.u32 [#allocation2], 4
      %s15 = int_to_ptr.vmem [resolvable:$true] %s14
      %20 = dma.hbm_to_vmem [thread:$0]  %s13, 256, %s15, [#allocation3], 128, 128, 8
    $region5: #{tpu_custom_call.1} parent=1 // pred_fallthru
      _
    // Predicated region
    $region6: #{tpu_custom_call.1} parent=1 // pred_check
      _
    $region7: #{tpu_custom_call.1} parent=1 // pred_check_branch
      %22 = sbr.rel (0) target = $region9
    $region8: #{tpu_custom_call.1} parent=1 // pred_region
      %24 = dma.done [#allocation3], 256
    $region9: #{tpu_custom_call.1} parent=1 // pred_fallthru
      _
    %v25 = vld [vmem:[#allocation2] sm:$0xff]
    %v26 = vld [vmem:[#allocation2 + $0x8] sm:$0xff]
    %v27 = vmin.f32 %v25, 20.0
    %v28 = vmin.f32 %v26, 20.0
    %v29 = vmul.f32 %v27, 1.442695
    %v30 = vpow.pop %v29
    %v31 = vmul.f32 %v28, 1.442695
    %v32 = vpow.pop %v31
    %v33 = vadd.f32 %v30, 2.0
    %v34 = vadd.f32 %v32, 2.0
    %v35 = vmul.f32 %v30, %v33
    %v36 = vmul.f32 %v32, %v34
    %v37 = vadd.f32 %v35, 2.0
    %v38 = vadd.f32 %v36, 2.0
    %v39 = vrcp.pop %v37
    %v40 = vmul.f32 %v37, %v39
    %v41 = vsub.f32 1.0, %v40
    %v42 = vmul.f32 %v39, %v41
    %v43 = vadd.f32 %v39, %v42
    %vm44 = vweird.f32 %v37
    %vm45 = vweird.f32 %v39
    %vm46 = vmor %vm44, %vm45
    %v47 = vsel %vm46, %v39, %v43
    %v48 = vand.u32 2147483647, %v37
    %vm49 = vcmp.eq.f32.partialorder %v48, 8.507059e+37
    %v50 = vand.u32 %v37, 2147483648
    %v51 = vor.u32 1.1754944e-38, %v50
    %v52 = vsel %vm49, %v51, %v47
    %v53 = vmul.f32 %v35, %v52
    %v54 = vrcp.pop %v38
    %v55 = vmul.f32 %v38, %v54
    %v56 = vsub.f32 1.0, %v55
    %v57 = vmul.f32 %v54, %v56
    %v58 = vadd.f32 %v54, %v57
    %vm59 = vweird.f32 %v38
    %vm60 = vweird.f32 %v54
    %vm61 = vmor %vm59, %vm60
    %v62 = vsel %vm61, %v54, %v58
    %v63 = vand.u32 2147483647, %v38
    %vm64 = vcmp.eq.f32.partialorder %v63, 8.507059e+37
    %v65 = vand.u32 %v38, 2147483648
    %v66 = vor.u32 1.1754944e-38, %v65
    %v67 = vsel %vm64, %v66, %v62
    %v68 = vmul.f32 %v36, %v67
    %v69 = vmul.f32 %v25, %v53
    %v70 = vmul.f32 %v26, %v68
    %71 = vst [vmem:[#allocation5] sm:$0xff] %v69
    %72 = vst [vmem:[#allocation5 + $0x8] sm:$0xff] %v70
    // Predicated region
    $region10: #{tpu_custom_call.1} parent=1 // pred_check
      _
    $region11: #{tpu_custom_call.1} parent=1 // pred_check_branch
      %74 = sbr.rel (0) target = $region13
    $region12: #{tpu_custom_call.1} parent=1 // pred_region
      %76 = vsyncadd [#allocation4], 0
      %s77 = sshll.u32 [#allocation5], 4
      %s78 = int_to_ptr.vmem [resolvable:$true] %s77
      %s79 = sshll.u32 %s1, 4
      %s80 = int_to_ptr.hbm [resolvable:$true] %s79
      %85 = dma.vmem_to_hbm [thread:$0]  %s78, 256, %s80, [#allocation4], 128, 128, 8
    $region13: #{tpu_custom_call.1} parent=1 // pred_fallthru
      _
    // Predicated region
    $region14: #{tpu_custom_call.1} parent=1 // pred_check
      _
    $region15: #{tpu_custom_call.1} parent=1 // pred_check_branch
      %87 = sbr.rel (0) target = $region17
    $region16: #{tpu_custom_call.1} parent=1 // pred_region
      %89 = dma.done [#allocation4], 256
    $region17: #{tpu_custom_call.1} parent=1 // pred_fallthru
      _
    %90 = vsyncpa [#allocation3], 1
    %91 = vsyncpa [#allocation4], 1

</llo_original>
